<compile_context>
chip_gen: v7x
topology: tpu7x:2x2x1
jax: 0.10.0
libtpu: 0.0.40
codegen_flags: <defaults>
</compile_context>

<pallas_src>
import functools

import numpy as np
import jax
import jax.numpy as jnp
from jax.experimental import pallas as pl
from jax.experimental.pallas import tpu as pltpu


def _penc_channels(org_channels: int) -> int:
    """Mirror of the PyTorch __init__ channel rounding."""
    channels = int(np.ceil(org_channels / 6) * 2)
    if channels % 2:
        channels += 1
    return channels


def _segment_tables(X, Y, Z, orig_ch):
    """Per-axis sin/cos tables, truncated and placed in their channel segment
    (zero-padded to orig_ch columns).  Pure jnp; runs once in the wrapper."""
    channels = _penc_channels(orig_ch)
    hc = channels // 2
    k = jnp.arange(hc, dtype=jnp.float32)
    inv_freq = 1.0 / (10000.0 ** (2.0 * k / channels))      # matches PyTorch

    n0 = min(channels, orig_ch)                      # x segment width
    n1 = min(channels, max(orig_ch - channels, 0))   # y segment width
    n2 = max(orig_ch - 2 * channels, 0)              # z segment width

    def emb(n_pos, keep, left_pad):
        pos = jnp.arange(n_pos, dtype=jnp.float32)
        inp = pos[:, None] * inv_freq[None, :]
        e = jnp.concatenate([jnp.sin(inp), jnp.cos(inp)], axis=-1)[:, :keep]
        return jnp.pad(e, ((0, 0), (left_pad, orig_ch - left_pad - keep)))

    ex = emb(X, n0, 0)              # (X, orig_ch)  x segment, zeros elsewhere
    ey = emb(Y, n1, n0)             # (Y, orig_ch)  y segment, zeros elsewhere
    ez = emb(Z, n2, n0 + n1)        # (Z, orig_ch)  z segment, zeros elsewhere
    return ex, ey, ez


def _penc3d_kernel(row_ref, lane_ref, out_ref, *, rep):
    """One (T_ROWS, L) output block: lane-tile the row table, add, store."""
    rp = row_ref[...]                                   # (T_ROWS, orig_ch) f32
    if rep > 1:
        rp = jnp.concatenate([rp] * rep, axis=-1)       # (T_ROWS, L)
    out_ref[...] = (rp + lane_ref[...]).astype(out_ref.dtype)


def positional_encoding_3d(tensor, *, use_pallas=None,
                           target_block_bytes=2 * 1024 * 1024):
    """Pallas equivalent of PositionalEncoding3D(orig_ch)(tensor)."""
    if tensor.ndim != 5:
        raise RuntimeError("The input tensor has to be 5d!")
    B, X, Y, Z, orig_ch = tensor.shape
    dtype = tensor.dtype
    itemsize = jnp.dtype(dtype).itemsize
    slab_bytes = X * Y * Z * orig_ch * itemsize

    ex, ey, ez = _segment_tables(X, Y, Z, orig_ch)

    if use_pallas is None:
        use_pallas = slab_bytes >= (64 << 10)
    if not use_pallas:
        # Small-problem escape hatch: a single fused XLA op beats the
        # custom-call launch + per-step overhead for tiny slabs.
        slab = (ex[:, None, None, :] + ey[None, :, None, :]
                + ez[None, None, :, :]).astype(dtype)          # (X,Y,Z,orig_ch)
        return jnp.broadcast_to(slab[None], (B, X, Y, Z, orig_ch))

    # ---- choose a lane-dense 2-D flattening of the (X,Y,Z,orig_ch) slab ----
    if (Z * orig_ch) % 128 == 0:
        R, L, rep = X * Y, Z * orig_ch, Z
        row_tab = (ex[:, None, :] + ey[None, :, :]).reshape(R, orig_ch)
        lane_tab = ez.reshape(1, L)
    elif (Y * Z * orig_ch) % 128 == 0:
        R, L, rep = X, Y * Z * orig_ch, Y * Z
        row_tab = ex
        lane_tab = (ey[:, None, :] + ez[None, :, :]).reshape(1, L)
    else:
        # TODO(synk): no lane-dense flattening exists for this shape; stores
        # fall back to masked vst (still correct, just slower writeback).
        R, L, rep = X * Y, Z * orig_ch, Z
        row_tab = (ex[:, None, :] + ey[None, :, :]).reshape(R, orig_ch)
        lane_tab = ez.reshape(1, L)

    # ---- sublane-aligned row tile, ~2 MiB output blocks, >=2 grid steps ----
    sub = max(8, 32 // itemsize)                 # 8 (f32) / 16 (bf16) / 32 (i8)
    t = max(1, target_block_bytes // max(L * itemsize, 1))
    if R >= 2 * sub:
        t = min(t, -(-R // 2))                   # >=2 grid steps (megacore + overlap)
    t = min(t, R)
    if t >= sub:
        t = (t // sub) * sub                     # keep vregs / writeback dense
    T_ROWS = max(1, t)
    grid = (pl.cdiv(R, T_ROWS),)

    kernel = functools.partial(_penc3d_kernel, rep=rep)
    penc2d = pl.pallas_call(
        kernel,
        out_shape=jax.ShapeDtypeStruct((R, L), dtype),
        grid=grid,
        in_specs=[
            pl.BlockSpec((T_ROWS, orig_ch), lambda i: (i, 0)),
            pl.BlockSpec((1, L), lambda i: (0, 0)),   # grid-invariant, VMEM-resident
        ],
        out_specs=pl.BlockSpec((T_ROWS, L), lambda i: (i, 0)),
        compiler_params=pltpu.CompilerParams(dimension_semantics=("parallel",)),
    )(row_tab, lane_tab)

    # Metadata-only reshape back to the PyTorch layout; broadcast lazily over
    # batch (consumers that fuse `tensor + penc` never materialize B copies).
    penc = penc2d.reshape(1, X, Y, Z, orig_ch)
    return jnp.broadcast_to(penc, (B, X, Y, Z, orig_ch))


def _reference_penc3d(tensor_np):
    """Pure-numpy reproduction of the PyTorch forward for verification."""
    B, X, Y, Z, orig_ch = tensor_np.shape
    channels = _penc_channels(orig_ch)
    inv_freq = 1.0 / (10000.0 ** (np.arange(0, channels, 2, dtype=np.float32) / channels))
    sx = np.einsum("i,j->ij", np.arange(X, dtype=np.float32), inv_freq)
    sy = np.einsum("i,j->ij", np.arange(Y, dtype=np.float32), inv_freq)
    sz = np.einsum("i,j->ij", np.arange(Z, dtype=np.float32), inv_freq)
    emb_x = np.concatenate([np.sin(sx), np.cos(sx)], axis=-1)
    emb_y = np.concatenate([np.sin(sy), np.cos(sy)], axis=-1)
    emb_z = np.concatenate([np.sin(sz), np.cos(sz)], axis=-1)
    emb = np.zeros((X, Y, Z, channels * 3), dtype=np.float32)
    emb[:, :, :, :channels] = emb_x[:, None, None, :]
    emb[:, :, :, channels:2 * channels] = emb_y[None, :, None, :]
    emb[:, :, :, 2 * channels:] = emb_z[None, None, :, :]
    out = np.broadcast_to(emb[None, :, :, :, :orig_ch], (B, X, Y, Z, orig_ch))
    return out.astype(tensor_np.dtype)


if __name__ == "__main__":
    key = jax.random.PRNGKey(0)

    # Main check: Pallas path, lane-dense XY flattening (R=256, L=128), 2 grid steps.
    B, X, Y, Z, C = 2, 16, 16, 4, 32
    x = jax.random.normal(key, (B, X, Y, Z, C), dtype=jnp.float32)
    out = jax.block_until_ready(positional_encoding_3d(x, use_pallas=True))
    np.testing.assert_allclose(np.asarray(out), _reference_penc3d(np.asarray(x)),
                               atol=1e-5, rtol=1e-5)

    # Ragged row count (R=40, T_ROWS=16 -> partially masked last block).
    x2 = jnp.zeros((1, 5, 8, 4, 32), dtype=jnp.float32)
    out2 = jax.block_until_ready(positional_encoding_3d(x2, use_pallas=True))
    np.testing.assert_allclose(np.asarray(out2), _reference_penc3d(np.asarray(x2)),
                               atol=1e-5, rtol=1e-5)

    # Z*C not a multiple of 128 -> fallback rows=X / lanes=Y*Z*C flattening (bf16 out).
    x3 = jnp.zeros((1, 16, 8, 2, 32), dtype=jnp.bfloat16)
    out3 = jax.block_until_ready(positional_encoding_3d(x3, use_pallas=True))
    ref3 = _reference_penc3d(np.zeros((1, 16, 8, 2, 32), dtype=np.float32))
    np.testing.assert_allclose(np.asarray(out3.astype(jnp.float32)), ref3,
                               atol=2e-2, rtol=2e-2)

    # Small / odd-channel problem: auto escape hatch (pure jnp, no pallas_call).
    x4 = jnp.zeros((2, 3, 2, 2, 10), dtype=jnp.float32)
    out4 = jax.block_until_ready(positional_encoding_3d(x4))
    np.testing.assert_allclose(np.asarray(out4), _reference_penc3d(np.asarray(x4)),
                               atol=1e-5, rtol=1e-5)

    print("KERNEL_OK")
</pallas_src>

<mosaic_0001>
module attributes {stable_mosaic.version = 11 : i64} {
  func.func @_penc3d_kernel(%arg0: i32, %arg1: memref<128x32xf32, #tpu.memory_space<vmem>>, %arg2: memref<1x128xf32, #tpu.memory_space<vmem>>, %arg3: memref<128x128xf32, #tpu.memory_space<vmem>>) attributes {dimension_semantics = [#tpu.dimension_semantics<parallel>], iteration_bounds = array<i64: 2>, scalar_prefetch = 0 : i64, scratch_operands = 0 : i64, tpu.core_type = #tpu.core_type<tc>, window_params = [{transform_indices = @transform_0, window_bounds = array<i64: 128, 32>}, {pipeline_mode = #tpu.pipeline_mode<synchronous>, transform_indices = @transform_1, window_bounds = array<i64: 1, 128>}, {transform_indices = @transform_2, window_bounds = array<i64: 128, 128>}]} {
    %c0 = arith.constant 0 : index
    %c0_0 = arith.constant 0 : index
    %0 = vector.load %arg1[%c0, %c0_0] : memref<128x32xf32, #tpu.memory_space<vmem>>, vector<128x32xf32>
    %1 = tpu.concatenate %0, %0, %0, %0 in 1 : vector<128x32xf32>, vector<128x32xf32>, vector<128x32xf32>, vector<128x32xf32> -> vector<128x128xf32>
    %c0_1 = arith.constant 0 : index
    %c0_2 = arith.constant 0 : index
    %2 = vector.load %arg2[%c0_1, %c0_2] : memref<1x128xf32, #tpu.memory_space<vmem>>, vector<1x128xf32>
    %3 = vector.broadcast %2 : vector<1x128xf32> to vector<128x128xf32>
    %4 = arith.addf %1, %3 : vector<128x128xf32>
    %c0_3 = arith.constant 0 : index
    %c0_4 = arith.constant 0 : index
    %5 = vector.load %arg3[%c0_3, %c0_4] : memref<128x128xf32, #tpu.memory_space<vmem>>, vector<128x128xf32>
    tpu.vector_store %arg3[%c0_3, %c0_4], %4 {strides = array<i32>} : memref<128x128xf32, #tpu.memory_space<vmem>>, vector<128x128xf32>,
    return
  }
  func.func @transform_0(%arg0: i32) -> (i32, i32) {
    %c0_i32 = arith.constant 0 : i32
    %c0_i32_0 = arith.constant 0 : i32
    return %arg0, %c0_i32 : i32, i32
  }
  func.func @transform_1(%arg0: i32) -> (i32, i32) {
    %c0_i32 = arith.constant 0 : i32
    %c0_i32_0 = arith.constant 0 : i32
    %c0_i32_1 = arith.constant 0 : i32
    return %c0_i32, %c0_i32_0 : i32, i32
  }
  func.func @transform_2(%arg0: i32) -> (i32, i32) {
    %c0_i32 = arith.constant 0 : i32
    %c0_i32_0 = arith.constant 0 : i32
    return %arg0, %c0_i32 : i32, i32
  }
}

</mosaic_0001>

<llo_original>
// kernel: tpu_custom_call.1
$region0: #{tpu_custom_call.1}
  #allocation0 [shape = 'u32[]', space=smem, size = 0x4, offset = 0x4, fixed_abs, tag = 'smem constant byte address 0x4 - core index']
  #allocation1 [shape = 'u32[144,128]{1,0:T(1,128)}', space=vmem, size = 0x12000, scoped, tag = 'internal scratch']
  %s0 = inlined_call_operand.vmem [shape: f32[256,32], index: 0, kind: input, shape index: {}]
  %s1 = inlined_call_operand.vmem [shape: f32[1,128], index: 1, kind: input, shape index: {}]
  %s2 = inlined_call_operand.hbm [shape: f32[256,128], index: 2, kind: output, shape index: {}]
  %s3 = sld [smem:[#allocation0]]
  $region41: #{tpu_custom_call.1} parent=0
    _
  %s5 = ssub.s32 1, %s3
  %s6 = scalar_select 0, %s5, %s3
  $region1: #{tpu_custom_call.1} parent=0
    #allocation2 [shape = 'u8[131072]{0}', space=vmem, size = 0x20000, scoped, tag = 'output window, operand 0']
    #allocation3 [shape = 's32[2]{0}', space=sflag, size = 0x8, scoped, tag = 'scoped memory for tpu_custom_call.1']
    %7 = vsyncpa [#allocation3], 0
    %s8 = scalar_lea.sflag [#allocation3], 1
    %9 = vsyncpa %s8, 0
    loop: start=0, step=1, limit=4
    $region2: #{tpu_custom_call.1} parent=1 // loop_pre_header
      _
    $region3: #{tpu_custom_call.1} parent=1 // loop_header
      %s11 = sphi 0, %s15
      %p12 = scmp.ge.s32.totalorder %s11, 4
      %s21 = sphi 0, %s23
      %s24 = sphi 0, %s21
      %s25 = sphi 0, %s24
      %s41 = sphi 0, %s25
      %s45 = sphi 0, %s45
      %s47 = sphi 0, %s45
      %s48 = sphi 0, %s47
      %s62 = sphi 0, %s48
      %s68 = sphi 0, %s70
      %s71 = sphi 0, %s68
      %s72 = sphi 0, %s71
      %s88 = sphi 0, %s72
    $region4: #{tpu_custom_call.1} parent=1 // loop_header_branch
      %14 = sbr.rel (%p12) target = $region8
    $region5: #{tpu_custom_call.1} parent=1 // loop_body
      %s16 = ssub.s32 %s11, 1
      %s17 = ssub.s32 %s11, 2
      %s18 = sadd.s32 %s11, 1
      %s19 = ssub.s32 %s11, %s18
      %p20 = scmp.eq.s32.totalorder %s19, 0
      %s22 = sadd.s32 %s21, 1
      %s23 = scalar_select %p20, %s21, %s22
      %p26 = pneg %p20
      %p27 = scmp.eq.s32.totalorder %s11, 1
      %p28 = por %p26, %p27
      %p29 = scmp.ne.s32.totalorder %s21, %s24
      %p30 = scmp.eq.s32.totalorder %s11, 0
      %p31 = por %p29, %p30
      %p32 = scmp.ne.s32.totalorder %s21, %s24
      %p33 = scmp.eq.s32.totalorder %s16, 1
      %p34 = por %p32, %p33
      %p35 = scmp.ne.s32.totalorder %s24, %s25
      %p36 = scmp.eq.s32.totalorder %s16, 0
      %p37 = por %p35, %p36
      %p38 = scmp.ne.s32.totalorder %s24, %s25
      %p39 = scmp.eq.s32.totalorder %s17, 1
      %p40 = por %p38, %p39
      %p42 = scmp.ne.s32.totalorder %s25, %s41
      %p43 = scmp.eq.s32.totalorder %s17, 0
      %p44 = por %p42, %p43
      %s46 = sadd.s32 %s45, 1
      %p49 = scmp.eq.s32.totalorder %s11, 1
      %p50 = scmp.ne.s32.totalorder %s45, %s47
      %p51 = scmp.eq.s32.totalorder %s11, 0
      %p52 = por %p50, %p51
      %p53 = scmp.ne.s32.totalorder %s45, %s47
      %p54 = scmp.eq.s32.totalorder %s16, 1
      %p55 = por %p53, %p54
      %p56 = scmp.ne.s32.totalorder %s47, %s48
      %p57 = scmp.eq.s32.totalorder %s16, 0
      %p58 = por %p56, %p57
      %p59 = scmp.ne.s32.totalorder %s47, %s48
      %p60 = scmp.eq.s32.totalorder %s17, 1
      %p61 = por %p59, %p60
      %p63 = scmp.ne.s32.totalorder %s48, %s62
      %p64 = scmp.eq.s32.totalorder %s17, 0
      %p65 = por %p63, %p64
      %s66 = ssub.s32 %s11, %s18
      %p67 = scmp.eq.s32.totalorder %s66, 0
      %s69 = sadd.s32 %s68, 1
      %s70 = scalar_select %p67, %s68, %s69
      %p73 = pneg %p67
      %p74 = scmp.eq.s32.totalorder %s11, 1
      %p75 = por %p73, %p74
      %p76 = scmp.ne.s32.totalorder %s68, %s71
      %p77 = scmp.eq.s32.totalorder %s11, 0
      %p78 = por %p76, %p77
      %p79 = scmp.ne.s32.totalorder %s68, %s71
      %p80 = scmp.eq.s32.totalorder %s16, 1
      %p81 = por %p79, %p80
      %p82 = scmp.ne.s32.totalorder %s71, %s72
      %p83 = scmp.eq.s32.totalorder %s16, 0
      %p84 = por %p82, %p83
      %p85 = scmp.ne.s32.totalorder %s71, %s72
      %p86 = scmp.eq.s32.totalorder %s17, 1
      %p87 = por %p85, %p86
      %p89 = scmp.ne.s32.totalorder %s72, %s88
      %p90 = scmp.eq.s32.totalorder %s17, 0
      %p91 = por %p89, %p90
      %p92 = scmp.le.s32.totalorder 1, %s11
      %p93 = scmp.lt.s32.totalorder %s11, 3
      %p94 = pnand %p92, %p93
      %p95 = pneg %p94
      // Predicated region
      $region9: #{tpu_custom_call.1} parent=5 // pred_check
        _
      $region10: #{tpu_custom_call.1} parent=5 // pred_check_branch
        %97 = sbr.rel (%p94) target = $region12
      $region11: #{tpu_custom_call.1} parent=5 // pred_region
        %s98 = ssub.s32 %s11, 1
        // Predicated region
        $region13: #{tpu_custom_call.1} parent=11 // pred_check
          %p99 = pneg %p58
        $region14: #{tpu_custom_call.1} parent=11 // pred_check_branch
          %101 = sbr.rel (%p99) target = $region16
        $region15: #{tpu_custom_call.1} parent=11 // pred_region
          _
        $region16: #{tpu_custom_call.1} parent=11 // pred_fallthru
          _
      $region12: #{tpu_custom_call.1} parent=5 // pred_fallthru
        _
      %p102 = scmp.lt.s32.totalorder %s11, 2
      // Predicated region
      $region17: #{tpu_custom_call.1} parent=5 // pred_check
        %p103 = pneg %p102
      $region18: #{tpu_custom_call.1} parent=5 // pred_check_branch
        %105 = sbr.rel (%p103) target = $region20
      $region19: #{tpu_custom_call.1} parent=5 // pred_region
        // Predicated region
        $region21: #{tpu_custom_call.1} parent=19 // pred_check
          %p106 = pneg %p31
        $region22: #{tpu_custom_call.1} parent=19 // pred_check_branch
          %108 = sbr.rel (%p106) target = $region24
        $region23: #{tpu_custom_call.1} parent=19 // pred_region
          %s109 = smul.u32 16, %s11
          %p110 = scmp.lt.s32.totalorder %s109, 31
          %s111 = scalar_select %p110, %s109, 31
          %s112 = smul.addr %s111, 8
          %s113 = scalar_lea.vmem %s0, %s112
          %s114 = smul.u32 16, %s11
        $region24: #{tpu_custom_call.1} parent=19 // pred_fallthru
          _
      $region20: #{tpu_custom_call.1} parent=5 // pred_fallthru
        _
      %p115 = scmp.le.s32.totalorder 1, %s11
      %p116 = scmp.lt.s32.totalorder %s11, 3
      %p117 = pnand %p115, %p116
      %p118 = pneg %p117
      // Predicated region
      $region25: #{tpu_custom_call.1} parent=5 // pred_check
        _
      $region26: #{tpu_custom_call.1} parent=5 // pred_check_branch
        %120 = sbr.rel (%p117) target = $region28
      $region27: #{tpu_custom_call.1} parent=5 // pred_region
        %s121 = ssub.s32 %s11, 1
        %s122 = smul.u32 16, %s16
        %p123 = scmp.lt.s32.totalorder %s122, 31
        %s124 = scalar_select %p123, %s122, 31
        %s125 = smul.addr %s124, 8
        %s126 = scalar_lea.vmem %s0, %s125
        %p127 = pneg %p37
        %p128 = pneg %p34
        %p129 = pneg %p58
        %p130 = pneg %p55
        %p131 = pneg %p84
        %p132 = pneg %p81
        %s133 = sand.u32 %s71, 1
        %s134 = scalar_lea.sflag [#allocation3], %s133
        %s135 = sand.u32 %s71, 1
        %s136 = smul.addr %s135, 128
        %s137 = scalar_lea.vmem [#allocation2], %s136
        %s138 = smul.u32 16, %s16
        %p139 = scmp.lt.s32.totalorder %s138, 31
        %s140 = scalar_select %p139, %s138, 31
        %s141 = smul.addr %s140, 8
        %s142 = scalar_lea.vmem %s0, %s141
        %s143 = smul.u32 16, %s16
        %s144 = smul.u32 16, %s16
        %v145 = vld [vmem:[%s142] sm:$0xff]
        %v146 = vld [vmem:[%s142 + $0x8] sm:$0xff]
        %v147 = vld [vmem:[%s142 + $0x10] sm:$0xff]
        %v148 = vld [vmem:[%s142 + $0x18] sm:$0xff]
        %v149 = vld [vmem:[%s142 + $0x20] sm:$0xff]
        %v150 = vld [vmem:[%s142 + $0x28] sm:$0xff]
        %v151 = vld [vmem:[%s142 + $0x30] sm:$0xff]
        %v152 = vld [vmem:[%s142 + $0x38] sm:$0xff]
        %v153 = vld [vmem:[%s142 + $0x40] sm:$0xff]
        %v154 = vld [vmem:[%s142 + $0x48] sm:$0xff]
        %v155 = vld [vmem:[%s142 + $0x50] sm:$0xff]
        %v156 = vld [vmem:[%s142 + $0x58] sm:$0xff]
        %v157 = vld [vmem:[%s142 + $0x60] sm:$0xff]
        %v158 = vld [vmem:[%s142 + $0x68] sm:$0xff]
        %v159 = vld [vmem:[%s142 + $0x70] sm:$0xff]
        %v160 = vld [vmem:[%s142 + $0x78] sm:$0xff]
        %177 = vrot.lane.b32.xlu0 %v145, 32
        %v178 = vpop.permute.xlu0 %177
        %179 = vrot.lane.b32.xlu0 %v146, 32
        %v180 = vpop.permute.xlu0 %179
        %181 = vrot.lane.b32.xlu0 %v147, 32
        %v182 = vpop.permute.xlu0 %181
        %183 = vrot.lane.b32.xlu0 %v148, 32
        %v184 = vpop.permute.xlu0 %183
        %185 = vrot.lane.b32.xlu0 %v149, 32
        %v186 = vpop.permute.xlu0 %185
        %187 = vrot.lane.b32.xlu0 %v150, 32
        %v188 = vpop.permute.xlu0 %187
        %189 = vrot.lane.b32.xlu0 %v151, 32
        %v190 = vpop.permute.xlu0 %189
        %191 = vrot.lane.b32.xlu0 %v152, 32
        %v192 = vpop.permute.xlu0 %191
        %193 = vrot.lane.b32.xlu0 %v153, 32
        %v194 = vpop.permute.xlu0 %193
        %195 = vrot.lane.b32.xlu0 %v154, 32
        %v196 = vpop.permute.xlu0 %195
        %197 = vrot.lane.b32.xlu0 %v155, 32
        %v198 = vpop.permute.xlu0 %197
        %199 = vrot.lane.b32.xlu0 %v156, 32
        %v200 = vpop.permute.xlu0 %199
        %201 = vrot.lane.b32.xlu0 %v157, 32
        %v202 = vpop.permute.xlu0 %201
        %203 = vrot.lane.b32.xlu0 %v158, 32
        %v204 = vpop.permute.xlu0 %203
        %205 = vrot.lane.b32.xlu0 %v159, 32
        %v206 = vpop.permute.xlu0 %205
        %207 = vrot.lane.b32.xlu0 %v160, 32
        %v208 = vpop.permute.xlu0 %207
        %225 = vrot.lane.b32.xlu0 %v145, 64
        %v226 = vpop.permute.xlu0 %225
        %227 = vrot.lane.b32.xlu0 %v146, 64
        %v228 = vpop.permute.xlu0 %227
        %229 = vrot.lane.b32.xlu0 %v147, 64
        %v230 = vpop.permute.xlu0 %229
        %231 = vrot.lane.b32.xlu0 %v148, 64
        %v232 = vpop.permute.xlu0 %231
        %233 = vrot.lane.b32.xlu0 %v149, 64
        %v234 = vpop.permute.xlu0 %233
        %235 = vrot.lane.b32.xlu0 %v150, 64
        %v236 = vpop.permute.xlu0 %235
        %237 = vrot.lane.b32.xlu0 %v151, 64
        %v238 = vpop.permute.xlu0 %237
        %239 = vrot.lane.b32.xlu0 %v152, 64
        %v240 = vpop.permute.xlu0 %239
        %241 = vrot.lane.b32.xlu0 %v153, 64
        %v242 = vpop.permute.xlu0 %241
        %243 = vrot.lane.b32.xlu0 %v154, 64
        %v244 = vpop.permute.xlu0 %243
        %245 = vrot.lane.b32.xlu0 %v155, 64
        %v246 = vpop.permute.xlu0 %245
        %247 = vrot.lane.b32.xlu0 %v156, 64
        %v248 = vpop.permute.xlu0 %247
        %249 = vrot.lane.b32.xlu0 %v157, 64
        %v250 = vpop.permute.xlu0 %249
        %251 = vrot.lane.b32.xlu0 %v158, 64
        %v252 = vpop.permute.xlu0 %251
        %253 = vrot.lane.b32.xlu0 %v159, 64
        %v254 = vpop.permute.xlu0 %253
        %255 = vrot.lane.b32.xlu0 %v160, 64
        %v256 = vpop.permute.xlu0 %255
        %273 = vrot.lane.b32.xlu0 %v145, 96
        %v274 = vpop.permute.xlu0 %273
        %275 = vrot.lane.b32.xlu0 %v146, 96
        %v276 = vpop.permute.xlu0 %275
        %277 = vrot.lane.b32.xlu0 %v147, 96
        %v278 = vpop.permute.xlu0 %277
        %279 = vrot.lane.b32.xlu0 %v148, 96
        %v280 = vpop.permute.xlu0 %279
        %281 = vrot.lane.b32.xlu0 %v149, 96
        %v282 = vpop.permute.xlu0 %281
        %283 = vrot.lane.b32.xlu0 %v150, 96
        %v284 = vpop.permute.xlu0 %283
        %285 = vrot.lane.b32.xlu0 %v151, 96
        %v286 = vpop.permute.xlu0 %285
        %287 = vrot.lane.b32.xlu0 %v152, 96
        %v288 = vpop.permute.xlu0 %287
        %289 = vrot.lane.b32.xlu0 %v153, 96
        %v290 = vpop.permute.xlu0 %289
        %291 = vrot.lane.b32.xlu0 %v154, 96
        %v292 = vpop.permute.xlu0 %291
        %293 = vrot.lane.b32.xlu0 %v155, 96
        %v294 = vpop.permute.xlu0 %293
        %295 = vrot.lane.b32.xlu0 %v156, 96
        %v296 = vpop.permute.xlu0 %295
        %297 = vrot.lane.b32.xlu0 %v157, 96
        %v298 = vpop.permute.xlu0 %297
        %299 = vrot.lane.b32.xlu0 %v158, 96
        %v300 = vpop.permute.xlu0 %299
        %301 = vrot.lane.b32.xlu0 %v159, 96
        %v302 = vpop.permute.xlu0 %301
        %303 = vrot.lane.b32.xlu0 %v160, 96
        %v304 = vpop.permute.xlu0 %303
        %vm321 = vcmask 261120
        %v322 = vsel %vm321, %v145, %v178
        %v323 = vsel %vm321, %v146, %v180
        %v324 = vsel %vm321, %v147, %v182
        %v325 = vsel %vm321, %v148, %v184
        %v326 = vsel %vm321, %v149, %v186
        %v327 = vsel %vm321, %v150, %v188
        %v328 = vsel %vm321, %v151, %v190
        %v329 = vsel %vm321, %v152, %v192
        %v330 = vsel %vm321, %v153, %v194
        %v331 = vsel %vm321, %v154, %v196
        %v332 = vsel %vm321, %v155, %v198
        %v333 = vsel %vm321, %v156, %v200
        %v334 = vsel %vm321, %v157, %v202
        %v335 = vsel %vm321, %v158, %v204
        %v336 = vsel %vm321, %v159, %v206
        %v337 = vsel %vm321, %v160, %v208
        %vm338 = vcmask 523264
        %v339 = vsel %vm338, %v322, %v226
        %v340 = vsel %vm338, %v323, %v228
        %v341 = vsel %vm338, %v324, %v230
        %v342 = vsel %vm338, %v325, %v232
        %v343 = vsel %vm338, %v326, %v234
        %v344 = vsel %vm338, %v327, %v236
        %v345 = vsel %vm338, %v328, %v238
        %v346 = vsel %vm338, %v329, %v240
        %v347 = vsel %vm338, %v330, %v242
        %v348 = vsel %vm338, %v331, %v244
        %v349 = vsel %vm338, %v332, %v246
        %v350 = vsel %vm338, %v333, %v248
        %v351 = vsel %vm338, %v334, %v250
        %v352 = vsel %vm338, %v335, %v252
        %v353 = vsel %vm338, %v336, %v254
        %v354 = vsel %vm338, %v337, %v256
        %vm355 = vcmask 785408
        %v356 = vsel %vm355, %v339, %v274
        %v357 = vsel %vm355, %v340, %v276
        %v358 = vsel %vm355, %v341, %v278
        %v359 = vsel %vm355, %v342, %v280
        %v360 = vsel %vm355, %v343, %v282
        %v361 = vsel %vm355, %v344, %v284
        %v362 = vsel %vm355, %v345, %v286
        %v363 = vsel %vm355, %v346, %v288
        %v364 = vsel %vm355, %v347, %v290
        %v365 = vsel %vm355, %v348, %v292
        %v366 = vsel %vm355, %v349, %v294
        %v367 = vsel %vm355, %v350, %v296
        %v368 = vsel %vm355, %v351, %v298
        %v369 = vsel %vm355, %v352, %v300
        %v370 = vsel %vm355, %v353, %v302
        %v371 = vsel %vm355, %v354, %v304
        %v372 = vld [vmem:[%s1] sm:$0x1]
        %v374 = vlaneseq
        %v375 = vshrl.u32 %v374, 7
        %v376 = vsub.s32 0, %v375
        %v377 = vrot.slane %v372, %v376
        %v379 = vadd.f32 %v356, %v377
        %v380 = vadd.f32 %v357, %v377
        %v381 = vadd.f32 %v358, %v377
        %v382 = vadd.f32 %v359, %v377
        %v383 = vadd.f32 %v360, %v377
        %v384 = vadd.f32 %v361, %v377
        %v385 = vadd.f32 %v362, %v377
        %v386 = vadd.f32 %v363, %v377
        %v387 = vadd.f32 %v364, %v377
        %v388 = vadd.f32 %v365, %v377
        %v389 = vadd.f32 %v366, %v377
        %v390 = vadd.f32 %v367, %v377
        %v391 = vadd.f32 %v368, %v377
        %v392 = vadd.f32 %v369, %v377
        %v393 = vadd.f32 %v370, %v377
        %v394 = vadd.f32 %v371, %v377
        %395 = vst [vmem:[%s137] sm:$0xff] %v379
        %396 = vst [vmem:[%s137 + $0x8] sm:$0xff] %v380
        %397 = vst [vmem:[%s137 + $0x10] sm:$0xff] %v381
        %398 = vst [vmem:[%s137 + $0x18] sm:$0xff] %v382
        %399 = vst [vmem:[%s137 + $0x20] sm:$0xff] %v383
        %400 = vst [vmem:[%s137 + $0x28] sm:$0xff] %v384
        %401 = vst [vmem:[%s137 + $0x30] sm:$0xff] %v385
        %402 = vst [vmem:[%s137 + $0x38] sm:$0xff] %v386
        %403 = vst [vmem:[%s137 + $0x40] sm:$0xff] %v387
        %404 = vst [vmem:[%s137 + $0x48] sm:$0xff] %v388
        %405 = vst [vmem:[%s137 + $0x50] sm:$0xff] %v389
        %406 = vst [vmem:[%s137 + $0x58] sm:$0xff] %v390
        %407 = vst [vmem:[%s137 + $0x60] sm:$0xff] %v391
        %408 = vst [vmem:[%s137 + $0x68] sm:$0xff] %v392
        %409 = vst [vmem:[%s137 + $0x70] sm:$0xff] %v393
        %410 = vst [vmem:[%s137 + $0x78] sm:$0xff] %v394
        %s411 = sand.u32 %s71, 1
        %s412 = scalar_lea.sflag [#allocation3], %s411
        %s413 = sand.u32 %s71, 1
        %s414 = smul.addr %s413, 128
        %s415 = scalar_lea.vmem [#allocation2], %s414
        // Predicated region
        $region29: #{tpu_custom_call.1} parent=27 // pred_check
          %p416 = pneg %p81
        $region30: #{tpu_custom_call.1} parent=27 // pred_check_branch
          %418 = sbr.rel (%p416) target = $region32
        $region31: #{tpu_custom_call.1} parent=27 // pred_region
          %s419 = smul.u32 16, %s16
          %s421 = ssub.s32 2048, 2048
          %422 = vsyncadd %s412, %s421
          %s423 = smul.addr %s419, 128
          %s424 = scalar_lea.hbm %s2, %s423
          %s425 = sshll.u32 %s415, 4
          %s426 = int_to_ptr.vmem [resolvable:$true] %s425
          %431 = dma.vmem_to_hbm [thread:$0]  %s426, 2048, %s424, %s412, 128, 128, 8
        $region32: #{tpu_custom_call.1} parent=27 // pred_fallthru
          _
      $region28: #{tpu_custom_call.1} parent=5 // pred_fallthru
        _
      %p432 = scmp.le.s32.totalorder 2, %s11
      // Predicated region
      $region33: #{tpu_custom_call.1} parent=5 // pred_check
        %p433 = pneg %p432
      $region34: #{tpu_custom_call.1} parent=5 // pred_check_branch
        %435 = sbr.rel (%p433) target = $region36
      $region35: #{tpu_custom_call.1} parent=5 // pred_region
        %s436 = ssub.s32 %s11, 2
        // Predicated region
        $region37: #{tpu_custom_call.1} parent=35 // pred_check
          %p437 = pneg %p87
        $region38: #{tpu_custom_call.1} parent=35 // pred_check_branch
          %439 = sbr.rel (%p437) target = $region40
        $region39: #{tpu_custom_call.1} parent=35 // pred_region
          %s440 = sand.u32 %s72, 1
          %s441 = scalar_lea.sflag [#allocation3], %s440
          %s442 = sand.u32 %s72, 1
          %s443 = smul.addr %s442, 128
          %s444 = scalar_lea.vmem [#allocation2], %s443
          %445 = dma.done %s441, 2048
        $region40: #{tpu_custom_call.1} parent=35 // pred_fallthru
          _
      $region36: #{tpu_custom_call.1} parent=5 // pred_fallthru
        _
    $region6: #{tpu_custom_call.1} parent=1 // loop_footer
      %s15 = sadd.s32 1, %s11
    $region7: #{tpu_custom_call.1} parent=1 // loop_footer_branch
      %10 = sbr.rel target = $region3
    $region8: #{tpu_custom_call.1} parent=1 // loop_exit
      _
    %446 = vsyncpa [#allocation3], 1
    %s447 = scalar_lea.sflag [#allocation3], 1
    %448 = vsyncpa %s447, 1

</llo_original>
